<compile_context>
chip_gen: v5e
topology: v5e:2x2
jax: 0.10.0
libtpu: 0.0.40
codegen_flags: <defaults>
</compile_context>

<pallas_src>
import functools

import jax
import jax.numpy as jnp
from jax.experimental import pallas as pl
from jax.experimental.pallas import tpu as pltpu


def _cdiv(a, b):
    return -(-a // b)


def _round_up(x, m):
    return _cdiv(x, m) * m


def actor_kernel(xt_ref, w1t_ref, b1_ref, w2t_ref, b2_ref, w3_ref, b3_ref, out_ref):
    """Fused MLP forward for one batch tile of TM columns (batch in lanes)."""
    xt = xt_ref[...]                              # (S, TM) f32
    state_size = xt.shape[0]
    action_size = out_ref.shape[0]

    # --- layer 1: K = state_size is tiny -> VPU broadcast FMAs, skip the MXU.
    acc = b1_ref[...]                             # (128, 1) -> broadcasts to (128, TM)
    for k in range(state_size):                   # static, unrolled at trace time
        acc = acc + w1t_ref[:, k:k + 1] * xt[k:k + 1, :]
    h1 = jnp.maximum(acc, 0.0)                    # (128, TM) f32

    # --- layer 2: bf16 MXU inputs, f32 accumulation.
    h2 = jnp.dot(w2t_ref[...], h1.astype(jnp.bfloat16),
                 preferred_element_type=jnp.float32) + b2_ref[...]
    h2 = jnp.maximum(h2, 0.0)                     # (256, TM) f32

    # --- layer 3 (logits): action_size is tiny -> per-action VPU multiply +
    # XLU sublane-reduce instead of a ~99%-wasted MXU pass.
    # TODO(synk): if action_size ever grows large (>8), switch this to a bf16
    # MXU dot with a pre-transposed (A, 256) weight.
    rows = []
    for j in range(action_size):                  # static, unrolled
        wj = w3_ref[:, j:j + 1]                   # (256, 1) f32
        rows.append(jnp.sum(h2 * wj, axis=0, keepdims=True))   # (1, TM)
    logits = jnp.concatenate(rows, axis=0) + b3_ref[...]       # (A, TM)

    # --- numerically-stable softmax over the action (sublane) axis.
    # Exact divide so probabilities sum to 1 to f32 precision.
    m = jnp.max(logits, axis=0, keepdims=True)
    e = jnp.exp(logits - m)
    denom = jnp.sum(e, axis=0, keepdims=True)
    out_ref[...] = (e / denom).astype(out_ref.dtype)


def actor_forward(x, params, *, tm_max=2048):
    """Pallas wrapper: feature-major layout, batch tiled along lanes."""
    w1t, b1, w2t, b2, w3, b3 = params
    batch, state_size = x.shape
    hidden1 = w1t.shape[0]
    hidden2 = w2t.shape[0]
    action_size = w3.shape[1]

    LANE = 128
    # Grid-step count: enough steps so each tile fits tm_max, chosen to
    # minimise padding; force >=2 steps when the batch is big enough to split
    # across v7x's two TensorCores (no-op on v5e/v6e).
    n_grid = max(1, _cdiv(batch, tm_max))
    if n_grid == 1 and batch > 256:
        n_grid = 2
    tm = _round_up(_cdiv(batch, n_grid), LANE)    # lane-dense tiles
    padded_batch = n_grid * tm

    xt = x.T                                      # (S, B): batch in lanes
    if padded_batch != batch:
        xt = jnp.pad(xt, ((0, 0), (0, padded_batch - batch)))

    cost = pl.CostEstimate(
        flops=2 * padded_batch * (state_size * hidden1
                                  + hidden1 * hidden2
                                  + hidden2 * action_size),
        transcendentals=padded_batch * action_size,
        bytes_accessed=(xt.size * 4 + w1t.size * 4 + w2t.size * 2 + w3.size * 4
                        + b1.size * 4 + b2.size * 4 + b3.size * 4
                        + padded_batch * action_size * 4),
    )

    out_t = pl.pallas_call(
        actor_kernel,
        out_shape=jax.ShapeDtypeStruct((action_size, padded_batch), jnp.float32),
        grid=(n_grid,),
        in_specs=[
            pl.BlockSpec((state_size, tm), lambda i: (0, i)),        # x^T (pipelined)
            pl.BlockSpec((hidden1, state_size), lambda i: (0, 0)),   # w1^T (resident)
            pl.BlockSpec((hidden1, 1), lambda i: (0, 0)),            # b1
            pl.BlockSpec((hidden2, hidden1), lambda i: (0, 0)),      # w2^T (bf16)
            pl.BlockSpec((hidden2, 1), lambda i: (0, 0)),            # b2
            pl.BlockSpec((hidden2, action_size), lambda i: (0, 0)),  # w3
            pl.BlockSpec((action_size, 1), lambda i: (0, 0)),        # b3
        ],
        out_specs=pl.BlockSpec((action_size, tm), lambda i: (0, i)), # lane-dense out
        compiler_params=pltpu.CompilerParams(
            dimension_semantics=("parallel",),
            vmem_limit_bytes=32 * 1024 * 1024),
        cost_estimate=cost,
    )(xt, w1t, b1, w2t, b2, w3, b3)

    out = out_t.T                                 # back to (padded_batch, A)
    if padded_batch != batch:
        out = out[:batch]
    return out
    # TODO(synk): Categorical sampling / log_prob are left to the caller; the
    # kernel returns the probability vector that defines the distribution.


def init_params(key, state_size, action_size):
    """Init mimicking nn.Linear U(-1/sqrt(fan_in), 1/sqrt(fan_in)).

    Parameters are stored in the kernel's feature-major layout:
      w1t: (128, S) f32, b1: (128, 1) f32
      w2t: (256, 128) bf16, b2: (256, 1) f32
      w3 : (256, A) f32,   b3: (A, 1) f32
    Computing W^T x^T is equivalent to PyTorch's x @ W.T + b.
    """
    def linear(k, fan_in, fan_out):
        kw, kb = jax.random.split(k)
        bound = 1.0 / jnp.sqrt(fan_in)
        w = jax.random.uniform(kw, (fan_in, fan_out), jnp.float32, -bound, bound)
        b = jax.random.uniform(kb, (fan_out,), jnp.float32, -bound, bound)
        return w, b

    k1, k2, k3 = jax.random.split(key, 3)
    w1, b1 = linear(k1, state_size, 128)
    w2, b2 = linear(k2, 128, 256)
    w3, b3 = linear(k3, 256, action_size)
    return (w1.T,                        # (128, S) f32
            b1.reshape(-1, 1),           # (128, 1) f32
            w2.T.astype(jnp.bfloat16),   # (256, 128) bf16
            b2.reshape(-1, 1),           # (256, 1) f32
            w3,                          # (256, A) f32
            b3.reshape(-1, 1))           # (A, 1) f32


def actor_reference(x, params):
    """Plain-JAX reference matching the kernel's bf16-layer-2 / f32 math."""
    w1t, b1, w2t, b2, w3, b3 = params
    h1 = jnp.maximum(x @ w1t.T + b1.T, 0.0)
    h2 = jnp.maximum(
        jnp.dot(h1.astype(jnp.bfloat16), w2t.T,
                preferred_element_type=jnp.float32) + b2.T, 0.0)
    logits = h2 @ w3 + b3.T
    return jax.nn.softmax(logits, axis=-1)


if __name__ == "__main__":
    # Small, CartPole-like sizes: state_size=4, action_size=2, batch=8.
    state_size, action_size, batch = 4, 2, 8

    key = jax.random.PRNGKey(0)
    k_params, k_x = jax.random.split(key)
    params = init_params(k_params, state_size, action_size)
    x = jax.random.normal(k_x, (batch, state_size), dtype=jnp.float32)

    run = jax.jit(functools.partial(actor_forward, tm_max=2048))
    probs = jax.block_until_ready(run(x, params))

    ref = actor_reference(x, params)
    assert probs.shape == (batch, action_size)
    assert jnp.allclose(probs, ref, atol=2e-3, rtol=2e-3), "mismatch vs reference"
    assert jnp.allclose(jnp.sum(probs, axis=-1), 1.0, atol=1e-3), "probs do not sum to 1"

    print("KERNEL_OK")
</pallas_src>

<mosaic_0001>
module attributes {stable_mosaic.version = 11 : i64} {
  func.func @actor_kernel(%arg0: i32, %arg1: memref<4x128xf32, #tpu.memory_space<vmem>>, %arg2: memref<128x4xf32, #tpu.memory_space<vmem>>, %arg3: memref<128x1xf32, #tpu.memory_space<vmem>>, %arg4: memref<256x128xbf16, #tpu.memory_space<vmem>>, %arg5: memref<256x1xf32, #tpu.memory_space<vmem>>, %arg6: memref<256x2xf32, #tpu.memory_space<vmem>>, %arg7: memref<2x1xf32, #tpu.memory_space<vmem>>, %arg8: memref<2x128xf32, #tpu.memory_space<vmem>>) attributes {dimension_semantics = [#tpu.dimension_semantics<parallel>], iteration_bounds = array<i64: 1>, scalar_prefetch = 0 : i64, scratch_operands = 0 : i64, tpu.core_type = #tpu.core_type<tc>, window_params = [{transform_indices = @transform_0, window_bounds = array<i64: 4, 128>}, {pipeline_mode = #tpu.pipeline_mode<synchronous>, transform_indices = @transform_1, window_bounds = array<i64: 128, 4>}, {pipeline_mode = #tpu.pipeline_mode<synchronous>, transform_indices = @transform_2, window_bounds = array<i64: 128, 1>}, {pipeline_mode = #tpu.pipeline_mode<synchronous>, transform_indices = @transform_3, window_bounds = array<i64: 256, 128>}, {pipeline_mode = #tpu.pipeline_mode<synchronous>, transform_indices = @transform_4, window_bounds = array<i64: 256, 1>}, {pipeline_mode = #tpu.pipeline_mode<synchronous>, transform_indices = @transform_5, window_bounds = array<i64: 256, 2>}, {pipeline_mode = #tpu.pipeline_mode<synchronous>, transform_indices = @transform_6, window_bounds = array<i64: 2, 1>}, {transform_indices = @transform_7, window_bounds = array<i64: 2, 128>}]} {
    %c0 = arith.constant 0 : index
    %c0_0 = arith.constant 0 : index
    %0 = vector.load %arg1[%c0, %c0_0] : memref<4x128xf32, #tpu.memory_space<vmem>>, vector<4x128xf32>
    %c0_1 = arith.constant 0 : index
    %c0_2 = arith.constant 0 : index
    %1 = vector.load %arg3[%c0_1, %c0_2] : memref<128x1xf32, #tpu.memory_space<vmem>>, vector<128x1xf32>
    %c0_3 = arith.constant 0 : index
    %c0_4 = arith.constant 0 : index
    %2 = vector.load %arg2[%c0_3, %c0_4] : memref<128x4xf32, #tpu.memory_space<vmem>>, vector<128x1xf32>
    %3 = vector.extract_strided_slice %0 {offsets = [0, 0], sizes = [1, 128], strides = [1, 1]} : vector<4x128xf32> to vector<1x128xf32>
    %4 = vector.broadcast %2 : vector<128x1xf32> to vector<128x128xf32>
    %5 = vector.broadcast %3 : vector<1x128xf32> to vector<128x128xf32>
    %6 = arith.mulf %4, %5 : vector<128x128xf32>
    %7 = vector.broadcast %1 : vector<128x1xf32> to vector<128x128xf32>
    %8 = arith.addf %7, %6 : vector<128x128xf32>
    %c0_5 = arith.constant 0 : index
    %c1 = arith.constant 1 : index
    %9 = vector.load %arg2[%c0_5, %c1] : memref<128x4xf32, #tpu.memory_space<vmem>>, vector<128x1xf32>
    %10 = vector.extract_strided_slice %0 {offsets = [1, 0], sizes = [1, 128], strides = [1, 1]} : vector<4x128xf32> to vector<1x128xf32>
    %11 = vector.broadcast %9 : vector<128x1xf32> to vector<128x128xf32>
    %12 = vector.broadcast %10 : vector<1x128xf32> to vector<128x128xf32>
    %13 = arith.mulf %11, %12 : vector<128x128xf32>
    %14 = arith.addf %8, %13 : vector<128x128xf32>
    %c0_6 = arith.constant 0 : index
    %c2 = arith.constant 2 : index
    %15 = vector.load %arg2[%c0_6, %c2] : memref<128x4xf32, #tpu.memory_space<vmem>>, vector<128x1xf32>
    %16 = vector.extract_strided_slice %0 {offsets = [2, 0], sizes = [1, 128], strides = [1, 1]} : vector<4x128xf32> to vector<1x128xf32>
    %17 = vector.broadcast %15 : vector<128x1xf32> to vector<128x128xf32>
    %18 = vector.broadcast %16 : vector<1x128xf32> to vector<128x128xf32>
    %19 = arith.mulf %17, %18 : vector<128x128xf32>
    %20 = arith.addf %14, %19 : vector<128x128xf32>
    %c0_7 = arith.constant 0 : index
    %c3 = arith.constant 3 : index
    %21 = vector.load %arg2[%c0_7, %c3] : memref<128x4xf32, #tpu.memory_space<vmem>>, vector<128x1xf32>
    %22 = vector.extract_strided_slice %0 {offsets = [3, 0], sizes = [1, 128], strides = [1, 1]} : vector<4x128xf32> to vector<1x128xf32>
    %23 = vector.broadcast %21 : vector<128x1xf32> to vector<128x128xf32>
    %24 = vector.broadcast %22 : vector<1x128xf32> to vector<128x128xf32>
    %25 = arith.mulf %23, %24 : vector<128x128xf32>
    %26 = arith.addf %20, %25 : vector<128x128xf32>
    %cst = arith.constant 0.000000e+00 : f32
    %27 = vector.broadcast %cst : f32 to vector<128x128xf32>
    %28 = arith.maximumf %26, %27 : vector<128x128xf32>
    %c0_8 = arith.constant 0 : index
    %c0_9 = arith.constant 0 : index
    %29 = vector.load %arg4[%c0_8, %c0_9] : memref<256x128xbf16, #tpu.memory_space<vmem>>, vector<256x128xbf16>
    %30 = arith.truncf %28 : vector<128x128xf32> to vector<128x128xbf16>
    %cst_10 = arith.constant dense<0.000000e+00> : vector<256x128xf32>
    %31 = tpu.matmul %29, %30, %cst_10 {dimension_numbers = #tpu.dot_dimension_numbers<[1], [0], [0], [1], [0, 0, 1, 1], [], []>} : vector<256x128xbf16>, vector<128x128xbf16>, vector<256x128xf32> -> vector<256x128xf32>
    %c0_11 = arith.constant 0 : index
    %c0_12 = arith.constant 0 : index
    %32 = vector.load %arg5[%c0_11, %c0_12] : memref<256x1xf32, #tpu.memory_space<vmem>>, vector<256x1xf32>
    %33 = vector.broadcast %32 : vector<256x1xf32> to vector<256x128xf32>
    %34 = arith.addf %31, %33 : vector<256x128xf32>
    %cst_13 = arith.constant 0.000000e+00 : f32
    %35 = vector.broadcast %cst_13 : f32 to vector<256x128xf32>
    %36 = arith.maximumf %34, %35 : vector<256x128xf32>
    %c0_14 = arith.constant 0 : index
    %c0_15 = arith.constant 0 : index
    %37 = vector.load %arg6[%c0_14, %c0_15] : memref<256x2xf32, #tpu.memory_space<vmem>>, vector<256x1xf32>
    %38 = vector.broadcast %37 : vector<256x1xf32> to vector<256x128xf32>
    %39 = arith.mulf %36, %38 : vector<256x128xf32>
    %cst_16 = arith.constant dense<0.000000e+00> : vector<128xf32>
    %40 = vector.multi_reduction <add>, %39, %cst_16 [0] : vector<256x128xf32> to vector<128xf32>
    %41 = vector.shape_cast %40 : vector<128xf32> to vector<1x128xf32>
    %c0_17 = arith.constant 0 : index
    %c1_18 = arith.constant 1 : index
    %42 = vector.load %arg6[%c0_17, %c1_18] : memref<256x2xf32, #tpu.memory_space<vmem>>, vector<256x1xf32>
    %43 = vector.broadcast %42 : vector<256x1xf32> to vector<256x128xf32>
    %44 = arith.mulf %36, %43 : vector<256x128xf32>
    %cst_19 = arith.constant dense<0.000000e+00> : vector<128xf32>
    %45 = vector.multi_reduction <add>, %44, %cst_19 [0] : vector<256x128xf32> to vector<128xf32>
    %46 = vector.shape_cast %45 : vector<128xf32> to vector<1x128xf32>
    %47 = tpu.concatenate %41, %46 in 0 : vector<1x128xf32>, vector<1x128xf32> -> vector<2x128xf32>
    %c0_20 = arith.constant 0 : index
    %c0_21 = arith.constant 0 : index
    %48 = vector.load %arg7[%c0_20, %c0_21] : memref<2x1xf32, #tpu.memory_space<vmem>>, vector<2x1xf32>
    %49 = vector.broadcast %48 : vector<2x1xf32> to vector<2x128xf32>
    %50 = arith.addf %47, %49 : vector<2x128xf32>
    %cst_22 = arith.constant dense<0xFF800000> : vector<128xf32>
    %51 = vector.multi_reduction <maximumf>, %50, %cst_22 [0] : vector<2x128xf32> to vector<128xf32>
    %52 = vector.shape_cast %51 : vector<128xf32> to vector<1x128xf32>
    %53 = vector.broadcast %52 : vector<1x128xf32> to vector<2x128xf32>
    %54 = arith.subf %50, %53 : vector<2x128xf32>
    %55 = math.exp %54 : vector<2x128xf32>
    %cst_23 = arith.constant dense<0.000000e+00> : vector<128xf32>
    %56 = vector.multi_reduction <add>, %55, %cst_23 [0] : vector<2x128xf32> to vector<128xf32>
    %57 = vector.shape_cast %56 : vector<128xf32> to vector<1x128xf32>
    %58 = vector.broadcast %57 : vector<1x128xf32> to vector<2x128xf32>
    %59 = arith.divf %55, %58 : vector<2x128xf32>
    %c0_24 = arith.constant 0 : index
    %c0_25 = arith.constant 0 : index
    %60 = vector.load %arg8[%c0_24, %c0_25] : memref<2x128xf32, #tpu.memory_space<vmem>>, vector<2x128xf32>
    tpu.vector_store %arg8[%c0_24, %c0_25], %59 {strides = array<i32>} : memref<2x128xf32, #tpu.memory_space<vmem>>, vector<2x128xf32>,
    return
  }
  func.func @transform_0(%arg0: i32) -> (i32, i32) {
    %c0_i32 = arith.constant 0 : i32
    %c0_i32_0 = arith.constant 0 : i32
    return %c0_i32, %arg0 : i32, i32
  }
  func.func @transform_1(%arg0: i32) -> (i32, i32) {
    %c0_i32 = arith.constant 0 : i32
    %c0_i32_0 = arith.constant 0 : i32
    %c0_i32_1 = arith.constant 0 : i32
    return %c0_i32, %c0_i32_0 : i32, i32
  }
  func.func @transform_2(%arg0: i32) -> (i32, i32) {
    %c0_i32 = arith.constant 0 : i32
    %c0_i32_0 = arith.constant 0 : i32
    %c0_i32_1 = arith.constant 0 : i32
    return %c0_i32, %c0_i32_0 : i32, i32
  }
  func.func @transform_3(%arg0: i32) -> (i32, i32) {
    %c0_i32 = arith.constant 0 : i32
    %c0_i32_0 = arith.constant 0 : i32
    %c0_i32_1 = arith.constant 0 : i32
    return %c0_i32, %c0_i32_0 : i32, i32
  }
  func.func @transform_4(%arg0: i32) -> (i32, i32) {
    %c0_i32 = arith.constant 0 : i32
    %c0_i32_0 = arith.constant 0 : i32
    %c0_i32_1 = arith.constant 0 : i32
    return %c0_i32, %c0_i32_0 : i32, i32
  }
  func.func @transform_5(%arg0: i32) -> (i32, i32) {
    %c0_i32 = arith.constant 0 : i32
    %c0_i32_0 = arith.constant 0 : i32
    %c0_i32_1 = arith.constant 0 : i32
    return %c0_i32, %c0_i32_0 : i32, i32
  }
  func.func @transform_6(%arg0: i32) -> (i32, i32) {
    %c0_i32 = arith.constant 0 : i32
    %c0_i32_0 = arith.constant 0 : i32
    %c0_i32_1 = arith.constant 0 : i32
    return %c0_i32, %c0_i32_0 : i32, i32
  }
  func.func @transform_7(%arg0: i32) -> (i32, i32) {
    %c0_i32 = arith.constant 0 : i32
    %c0_i32_0 = arith.constant 0 : i32
    return %c0_i32, %arg0 : i32, i32
  }
}

</mosaic_0001>

<llo_original>
// kernel: actor_forward.1
$region0: #{actor_forward.1}
  #allocation0 [shape = 'u32[]', space=smem, size = 0x4, offset = 0x4, fixed_abs, tag = 'smem constant byte address 0x4 - core index']
  #allocation1 [shape = 'u32[72,128]{1,0:T(1,128)}', space=vmem, size = 0x9000, scoped, tag = 'internal scratch']
  %s0 = inlined_call_operand.vmem [shape: f32[4,128], index: 0, kind: input, shape index: {}]
  %s1 = inlined_call_operand.vmem [shape: f32[128,4], index: 1, kind: input, shape index: {}]
  %s2 = inlined_call_operand.vmem [shape: f32[128,1], index: 2, kind: input, shape index: {}]
  %s3 = inlined_call_operand.vmem [shape: bf16[256,128], index: 3, kind: input, shape index: {}]
  %s4 = inlined_call_operand.vmem [shape: f32[256,1], index: 4, kind: input, shape index: {}]
  %s5 = inlined_call_operand.vmem [shape: f32[256,2], index: 5, kind: input, shape index: {}]
  %s6 = inlined_call_operand.vmem [shape: f32[2,1], index: 6, kind: input, shape index: {}]
  %s7 = inlined_call_operand.hbm [shape: f32[2,128], index: 7, kind: output, shape index: {}]
  %s8 = sld [smem:[#allocation0]]
  $region38: #{actor_forward.1} parent=0
    _
  %s10 = ssub.s32 1, %s8
  %s11 = scalar_select 0, %s10, %s8
  $region1: #{actor_forward.1} parent=0
    #allocation2 [shape = 'u8[1024]{0}', space=vmem, size = 0x400, scoped, tag = 'output window, operand 0, single buffered']
    #allocation3 [shape = 's32[1]{0}', space=sflag, size = 0x4, scoped, tag = 'scoped memory for actor_forward.1']
    %12 = vsyncpa [#allocation3], 0
    // Predicated region
    $region2: #{actor_forward.1} parent=1 // pred_check
      _
    $region3: #{actor_forward.1} parent=1 // pred_check_branch
      %14 = sbr.rel (0) target = $region5
    $region4: #{actor_forward.1} parent=1 // pred_region
      _
    $region5: #{actor_forward.1} parent=1 // pred_fallthru
      _
    // Predicated region
    $region6: #{actor_forward.1} parent=1 // pred_check
      _
    $region7: #{actor_forward.1} parent=1 // pred_check_branch
      %16 = sbr.rel (0) target = $region9
    $region8: #{actor_forward.1} parent=1 // pred_region
      _
    $region9: #{actor_forward.1} parent=1 // pred_fallthru
      _
    // Predicated region
    $region10: #{actor_forward.1} parent=1 // pred_check
      _
    $region11: #{actor_forward.1} parent=1 // pred_check_branch
      %18 = sbr.rel (0) target = $region13
    $region12: #{actor_forward.1} parent=1 // pred_region
      _
    $region13: #{actor_forward.1} parent=1 // pred_fallthru
      _
    // Predicated region
    $region14: #{actor_forward.1} parent=1 // pred_check
      _
    $region15: #{actor_forward.1} parent=1 // pred_check_branch
      %20 = sbr.rel (0) target = $region17
    $region16: #{actor_forward.1} parent=1 // pred_region
      _
    $region17: #{actor_forward.1} parent=1 // pred_fallthru
      _
    // Predicated region
    $region18: #{actor_forward.1} parent=1 // pred_check
      _
    $region19: #{actor_forward.1} parent=1 // pred_check_branch
      %22 = sbr.rel (0) target = $region21
    $region20: #{actor_forward.1} parent=1 // pred_region
      _
    $region21: #{actor_forward.1} parent=1 // pred_fallthru
      _
    // Predicated region
    $region22: #{actor_forward.1} parent=1 // pred_check
      _
    $region23: #{actor_forward.1} parent=1 // pred_check_branch
      %24 = sbr.rel (0) target = $region25
    $region24: #{actor_forward.1} parent=1 // pred_region
      _
    $region25: #{actor_forward.1} parent=1 // pred_fallthru
      _
    // Predicated region
    $region26: #{actor_forward.1} parent=1 // pred_check
      _
    $region27: #{actor_forward.1} parent=1 // pred_check_branch
      %26 = sbr.rel (0) target = $region29
    $region28: #{actor_forward.1} parent=1 // pred_region
      _
    $region29: #{actor_forward.1} parent=1 // pred_fallthru
      _
    %v27 = vld [vmem:[%s0] sm:$0xf]
    %v28 = vld [vmem:[%s2] sm:$0xff]
    %v29 = vld [vmem:[%s2 + $0x8] sm:$0xff]
    %v30 = vld [vmem:[%s2 + $0x10] sm:$0xff]
    %v31 = vld [vmem:[%s2 + $0x18] sm:$0xff]
    %v32 = vld [vmem:[%s2 + $0x20] sm:$0xff]
    %v33 = vld [vmem:[%s2 + $0x28] sm:$0xff]
    %v34 = vld [vmem:[%s2 + $0x30] sm:$0xff]
    %v35 = vld [vmem:[%s2 + $0x38] sm:$0xff]
    %v36 = vld [vmem:[%s2 + $0x40] sm:$0xff]
    %v37 = vld [vmem:[%s2 + $0x48] sm:$0xff]
    %v38 = vld [vmem:[%s2 + $0x50] sm:$0xff]
    %v39 = vld [vmem:[%s2 + $0x58] sm:$0xff]
    %v40 = vld [vmem:[%s2 + $0x60] sm:$0xff]
    %v41 = vld [vmem:[%s2 + $0x68] sm:$0xff]
    %v42 = vld [vmem:[%s2 + $0x70] sm:$0xff]
    %v43 = vld [vmem:[%s2 + $0x78] sm:$0xff]
    %v44 = vld [vmem:[%s1] sm:$0xff]
    %v45 = vld [vmem:[%s1 + $0x8] sm:$0xff]
    %v46 = vld [vmem:[%s1 + $0x10] sm:$0xff]
    %v47 = vld [vmem:[%s1 + $0x18] sm:$0xff]
    %v48 = vld [vmem:[%s1 + $0x20] sm:$0xff]
    %v49 = vld [vmem:[%s1 + $0x28] sm:$0xff]
    %v50 = vld [vmem:[%s1 + $0x30] sm:$0xff]
    %v51 = vld [vmem:[%s1 + $0x38] sm:$0xff]
    %v52 = vld [vmem:[%s1 + $0x40] sm:$0xff]
    %v53 = vld [vmem:[%s1 + $0x48] sm:$0xff]
    %v54 = vld [vmem:[%s1 + $0x50] sm:$0xff]
    %v55 = vld [vmem:[%s1 + $0x58] sm:$0xff]
    %v56 = vld [vmem:[%s1 + $0x60] sm:$0xff]
    %v57 = vld [vmem:[%s1 + $0x68] sm:$0xff]
    %v58 = vld [vmem:[%s1 + $0x70] sm:$0xff]
    %v59 = vld [vmem:[%s1 + $0x78] sm:$0xff]
    %61 = vset.pattern.permute.xlu0 0
    %62 = vperm.xlu0 %61, %v44
    %v63 = vpop.permute.xlu0 %62
    %66 = vset.pattern.permute.xlu0 0
    %67 = vperm.xlu0 %66, %v45
    %v68 = vpop.permute.xlu0 %67
    %71 = vset.pattern.permute.xlu0 0
    %72 = vperm.xlu0 %71, %v46
    %v73 = vpop.permute.xlu0 %72
    %76 = vset.pattern.permute.xlu0 0
    %77 = vperm.xlu0 %76, %v47
    %v78 = vpop.permute.xlu0 %77
    %81 = vset.pattern.permute.xlu0 0
    %82 = vperm.xlu0 %81, %v48
    %v83 = vpop.permute.xlu0 %82
    %86 = vset.pattern.permute.xlu0 0
    %87 = vperm.xlu0 %86, %v49
    %v88 = vpop.permute.xlu0 %87
    %91 = vset.pattern.permute.xlu0 0
    %92 = vperm.xlu0 %91, %v50
    %v93 = vpop.permute.xlu0 %92
    %96 = vset.pattern.permute.xlu0 0
    %97 = vperm.xlu0 %96, %v51
    %v98 = vpop.permute.xlu0 %97
    %101 = vset.pattern.permute.xlu0 0
    %102 = vperm.xlu0 %101, %v52
    %v103 = vpop.permute.xlu0 %102
    %106 = vset.pattern.permute.xlu0 0
    %107 = vperm.xlu0 %106, %v53
    %v108 = vpop.permute.xlu0 %107
    %111 = vset.pattern.permute.xlu0 0
    %112 = vperm.xlu0 %111, %v54
    %v113 = vpop.permute.xlu0 %112
    %116 = vset.pattern.permute.xlu0 0
    %117 = vperm.xlu0 %116, %v55
    %v118 = vpop.permute.xlu0 %117
    %121 = vset.pattern.permute.xlu0 0
    %122 = vperm.xlu0 %121, %v56
    %v123 = vpop.permute.xlu0 %122
    %126 = vset.pattern.permute.xlu0 0
    %127 = vperm.xlu0 %126, %v57
    %v128 = vpop.permute.xlu0 %127
    %131 = vset.pattern.permute.xlu0 0
    %132 = vperm.xlu0 %131, %v58
    %v133 = vpop.permute.xlu0 %132
    %136 = vset.pattern.permute.xlu0 0
    %137 = vperm.xlu0 %136, %v59
    %v138 = vpop.permute.xlu0 %137
    %v140 = vperm.slane %v27, 0
    %v141 = vmul.f32 %v63, %v140
    %v142 = vmul.f32 %v68, %v140
    %v143 = vmul.f32 %v73, %v140
    %v144 = vmul.f32 %v78, %v140
    %v145 = vmul.f32 %v83, %v140
    %v146 = vmul.f32 %v88, %v140
    %v147 = vmul.f32 %v93, %v140
    %v148 = vmul.f32 %v98, %v140
    %v149 = vmul.f32 %v103, %v140
    %v150 = vmul.f32 %v108, %v140
    %v151 = vmul.f32 %v113, %v140
    %v152 = vmul.f32 %v118, %v140
    %v153 = vmul.f32 %v123, %v140
    %v154 = vmul.f32 %v128, %v140
    %v155 = vmul.f32 %v133, %v140
    %v156 = vmul.f32 %v138, %v140
    %158 = vset.pattern.permute.xlu0 0
    %159 = vperm.xlu0 %158, %v28
    %v160 = vpop.permute.xlu0 %159
    %163 = vset.pattern.permute.xlu0 0
    %164 = vperm.xlu0 %163, %v29
    %v165 = vpop.permute.xlu0 %164
    %168 = vset.pattern.permute.xlu0 0
    %169 = vperm.xlu0 %168, %v30
    %v170 = vpop.permute.xlu0 %169
    %173 = vset.pattern.permute.xlu0 0
    %174 = vperm.xlu0 %173, %v31
    %v175 = vpop.permute.xlu0 %174
    %178 = vset.pattern.permute.xlu0 0
    %179 = vperm.xlu0 %178, %v32
    %v180 = vpop.permute.xlu0 %179
    %183 = vset.pattern.permute.xlu0 0
    %184 = vperm.xlu0 %183, %v33
    %v185 = vpop.permute.xlu0 %184
    %188 = vset.pattern.permute.xlu0 0
    %189 = vperm.xlu0 %188, %v34
    %v190 = vpop.permute.xlu0 %189
    %193 = vset.pattern.permute.xlu0 0
    %194 = vperm.xlu0 %193, %v35
    %v195 = vpop.permute.xlu0 %194
    %198 = vset.pattern.permute.xlu0 0
    %199 = vperm.xlu0 %198, %v36
    %v200 = vpop.permute.xlu0 %199
    %203 = vset.pattern.permute.xlu0 0
    %204 = vperm.xlu0 %203, %v37
    %v205 = vpop.permute.xlu0 %204
    %208 = vset.pattern.permute.xlu0 0
    %209 = vperm.xlu0 %208, %v38
    %v210 = vpop.permute.xlu0 %209
    %213 = vset.pattern.permute.xlu0 0
    %214 = vperm.xlu0 %213, %v39
    %v215 = vpop.permute.xlu0 %214
    %218 = vset.pattern.permute.xlu0 0
    %219 = vperm.xlu0 %218, %v40
    %v220 = vpop.permute.xlu0 %219
    %223 = vset.pattern.permute.xlu0 0
    %224 = vperm.xlu0 %223, %v41
    %v225 = vpop.permute.xlu0 %224
    %228 = vset.pattern.permute.xlu0 0
    %229 = vperm.xlu0 %228, %v42
    %v230 = vpop.permute.xlu0 %229
    %233 = vset.pattern.permute.xlu0 0
    %234 = vperm.xlu0 %233, %v43
    %v235 = vpop.permute.xlu0 %234
    %v237 = vadd.f32 %v160, %v141
    %v238 = vadd.f32 %v165, %v142
    %v239 = vadd.f32 %v170, %v143
    %v240 = vadd.f32 %v175, %v144
    %v241 = vadd.f32 %v180, %v145
    %v242 = vadd.f32 %v185, %v146
    %v243 = vadd.f32 %v190, %v147
    %v244 = vadd.f32 %v195, %v148
    %v245 = vadd.f32 %v200, %v149
    %v246 = vadd.f32 %v205, %v150
    %v247 = vadd.f32 %v210, %v151
    %v248 = vadd.f32 %v215, %v152
    %v249 = vadd.f32 %v220, %v153
    %v250 = vadd.f32 %v225, %v154
    %v251 = vadd.f32 %v230, %v155
    %v252 = vadd.f32 %v235, %v156
    %253 = vset.pattern.permute.xlu0 1
    %254 = vperm.xlu0 %253, %v44
    %v255 = vpop.permute.xlu0 %254
    %257 = vset.pattern.permute.xlu0 1
    %258 = vperm.xlu0 %257, %v45
    %v259 = vpop.permute.xlu0 %258
    %261 = vset.pattern.permute.xlu0 1
    %262 = vperm.xlu0 %261, %v46
    %v263 = vpop.permute.xlu0 %262
    %265 = vset.pattern.permute.xlu0 1
    %266 = vperm.xlu0 %265, %v47
    %v267 = vpop.permute.xlu0 %266
    %269 = vset.pattern.permute.xlu0 1
    %270 = vperm.xlu0 %269, %v48
    %v271 = vpop.permute.xlu0 %270
    %273 = vset.pattern.permute.xlu0 1
    %274 = vperm.xlu0 %273, %v49
    %v275 = vpop.permute.xlu0 %274
    %277 = vset.pattern.permute.xlu0 1
    %278 = vperm.xlu0 %277, %v50
    %v279 = vpop.permute.xlu0 %278
    %281 = vset.pattern.permute.xlu0 1
    %282 = vperm.xlu0 %281, %v51
    %v283 = vpop.permute.xlu0 %282
    %285 = vset.pattern.permute.xlu0 1
    %286 = vperm.xlu0 %285, %v52
    %v287 = vpop.permute.xlu0 %286
    %289 = vset.pattern.permute.xlu0 1
    %290 = vperm.xlu0 %289, %v53
    %v291 = vpop.permute.xlu0 %290
    %293 = vset.pattern.permute.xlu0 1
    %294 = vperm.xlu0 %293, %v54
    %v295 = vpop.permute.xlu0 %294
    %297 = vset.pattern.permute.xlu0 1
    %298 = vperm.xlu0 %297, %v55
    %v299 = vpop.permute.xlu0 %298
    %301 = vset.pattern.permute.xlu0 1
    %302 = vperm.xlu0 %301, %v56
    %v303 = vpop.permute.xlu0 %302
    %305 = vset.pattern.permute.xlu0 1
    %306 = vperm.xlu0 %305, %v57
    %v307 = vpop.permute.xlu0 %306
    %309 = vset.pattern.permute.xlu0 1
    %310 = vperm.xlu0 %309, %v58
    %v311 = vpop.permute.xlu0 %310
    %313 = vset.pattern.permute.xlu0 1
    %314 = vperm.xlu0 %313, %v59
    %v315 = vpop.permute.xlu0 %314
    %v317 = vperm.slane %v27, 1
    %v318 = vmul.f32 %v255, %v317
    %v319 = vmul.f32 %v259, %v317
    %v320 = vmul.f32 %v263, %v317
    %v321 = vmul.f32 %v267, %v317
    %v322 = vmul.f32 %v271, %v317
    %v323 = vmul.f32 %v275, %v317
    %v324 = vmul.f32 %v279, %v317
    %v325 = vmul.f32 %v283, %v317
    %v326 = vmul.f32 %v287, %v317
    %v327 = vmul.f32 %v291, %v317
    %v328 = vmul.f32 %v295, %v317
    %v329 = vmul.f32 %v299, %v317
    %v330 = vmul.f32 %v303, %v317
    %v331 = vmul.f32 %v307, %v317
    %v332 = vmul.f32 %v311, %v317
    %v333 = vmul.f32 %v315, %v317
    %v334 = vadd.f32 %v237, %v318
    %v335 = vadd.f32 %v238, %v319
    %v336 = vadd.f32 %v239, %v320
    %v337 = vadd.f32 %v240, %v321
    %v338 = vadd.f32 %v241, %v322
    %v339 = vadd.f32 %v242, %v323
    %v340 = vadd.f32 %v243, %v324
    %v341 = vadd.f32 %v244, %v325
    %v342 = vadd.f32 %v245, %v326
    %v343 = vadd.f32 %v246, %v327
    %v344 = vadd.f32 %v247, %v328
    %v345 = vadd.f32 %v248, %v329
    %v346 = vadd.f32 %v249, %v330
    %v347 = vadd.f32 %v250, %v331
    %v348 = vadd.f32 %v251, %v332
    %v349 = vadd.f32 %v252, %v333
    %350 = vset.pattern.permute.xlu0 2
    %351 = vperm.xlu0 %350, %v44
    %v352 = vpop.permute.xlu0 %351
    %354 = vset.pattern.permute.xlu0 2
    %355 = vperm.xlu0 %354, %v45
    %v356 = vpop.permute.xlu0 %355
    %358 = vset.pattern.permute.xlu0 2
    %359 = vperm.xlu0 %358, %v46
    %v360 = vpop.permute.xlu0 %359
    %362 = vset.pattern.permute.xlu0 2
    %363 = vperm.xlu0 %362, %v47
    %v364 = vpop.permute.xlu0 %363
    %366 = vset.pattern.permute.xlu0 2
    %367 = vperm.xlu0 %366, %v48
    %v368 = vpop.permute.xlu0 %367
    %370 = vset.pattern.permute.xlu0 2
    %371 = vperm.xlu0 %370, %v49
    %v372 = vpop.permute.xlu0 %371
    %374 = vset.pattern.permute.xlu0 2
    %375 = vperm.xlu0 %374, %v50
    %v376 = vpop.permute.xlu0 %375
    %378 = vset.pattern.permute.xlu0 2
    %379 = vperm.xlu0 %378, %v51
    %v380 = vpop.permute.xlu0 %379
    %382 = vset.pattern.permute.xlu0 2
    %383 = vperm.xlu0 %382, %v52
    %v384 = vpop.permute.xlu0 %383
    %386 = vset.pattern.permute.xlu0 2
    %387 = vperm.xlu0 %386, %v53
    %v388 = vpop.permute.xlu0 %387
    %390 = vset.pattern.permute.xlu0 2
    %391 = vperm.xlu0 %390, %v54
    %v392 = vpop.permute.xlu0 %391
    %394 = vset.pattern.permute.xlu0 2
    %395 = vperm.xlu0 %394, %v55
    %v396 = vpop.permute.xlu0 %395
    %398 = vset.pattern.permute.xlu0 2
    %399 = vperm.xlu0 %398, %v56
    %v400 = vpop.permute.xlu0 %399
    %402 = vset.pattern.permute.xlu0 2
    %403 = vperm.xlu0 %402, %v57
    %v404 = vpop.permute.xlu0 %403
    %406 = vset.pattern.permute.xlu0 2
    %407 = vperm.xlu0 %406, %v58
    %v408 = vpop.permute.xlu0 %407
    %410 = vset.pattern.permute.xlu0 2
    %411 = vperm.xlu0 %410, %v59
    %v412 = vpop.permute.xlu0 %411
    %v414 = vperm.slane %v27, 2
    %v415 = vmul.f32 %v352, %v414
    %v416 = vmul.f32 %v356, %v414
    %v417 = vmul.f32 %v360, %v414
    %v418 = vmul.f32 %v364, %v414
    %v419 = vmul.f32 %v368, %v414
    %v420 = vmul.f32 %v372, %v414
    %v421 = vmul.f32 %v376, %v414
    %v422 = vmul.f32 %v380, %v414
    %v423 = vmul.f32 %v384, %v414
    %v424 = vmul.f32 %v388, %v414
    %v425 = vmul.f32 %v392, %v414
    %v426 = vmul.f32 %v396, %v414
    %v427 = vmul.f32 %v400, %v414
    %v428 = vmul.f32 %v404, %v414
    %v429 = vmul.f32 %v408, %v414
    %v430 = vmul.f32 %v412, %v414
    %v431 = vadd.f32 %v334, %v415
    %v432 = vadd.f32 %v335, %v416
    %v433 = vadd.f32 %v336, %v417
    %v434 = vadd.f32 %v337, %v418
    %v435 = vadd.f32 %v338, %v419
    %v436 = vadd.f32 %v339, %v420
    %v437 = vadd.f32 %v340, %v421
    %v438 = vadd.f32 %v341, %v422
    %v439 = vadd.f32 %v342, %v423
    %v440 = vadd.f32 %v343, %v424
    %v441 = vadd.f32 %v344, %v425
    %v442 = vadd.f32 %v345, %v426
    %v443 = vadd.f32 %v346, %v427
    %v444 = vadd.f32 %v347, %v428
    %v445 = vadd.f32 %v348, %v429
    %v446 = vadd.f32 %v349, %v430
    %447 = vset.pattern.permute.xlu0 3
    %448 = vperm.xlu0 %447, %v44
    %v449 = vpop.permute.xlu0 %448
    %451 = vset.pattern.permute.xlu0 3
    %452 = vperm.xlu0 %451, %v45
    %v453 = vpop.permute.xlu0 %452
    %455 = vset.pattern.permute.xlu0 3
    %456 = vperm.xlu0 %455, %v46
    %v457 = vpop.permute.xlu0 %456
    %459 = vset.pattern.permute.xlu0 3
    %460 = vperm.xlu0 %459, %v47
    %v461 = vpop.permute.xlu0 %460
    %463 = vset.pattern.permute.xlu0 3
    %464 = vperm.xlu0 %463, %v48
    %v465 = vpop.permute.xlu0 %464
    %467 = vset.pattern.permute.xlu0 3
    %468 = vperm.xlu0 %467, %v49
    %v469 = vpop.permute.xlu0 %468
    %471 = vset.pattern.permute.xlu0 3
    %472 = vperm.xlu0 %471, %v50
    %v473 = vpop.permute.xlu0 %472
    %475 = vset.pattern.permute.xlu0 3
    %476 = vperm.xlu0 %475, %v51
    %v477 = vpop.permute.xlu0 %476
    %479 = vset.pattern.permute.xlu0 3
    %480 = vperm.xlu0 %479, %v52
    %v481 = vpop.permute.xlu0 %480
    %483 = vset.pattern.permute.xlu0 3
    %484 = vperm.xlu0 %483, %v53
    %v485 = vpop.permute.xlu0 %484
    %487 = vset.pattern.permute.xlu0 3
    %488 = vperm.xlu0 %487, %v54
    %v489 = vpop.permute.xlu0 %488
    %491 = vset.pattern.permute.xlu0 3
    %492 = vperm.xlu0 %491, %v55
    %v493 = vpop.permute.xlu0 %492
    %495 = vset.pattern.permute.xlu0 3
    %496 = vperm.xlu0 %495, %v56
    %v497 = vpop.permute.xlu0 %496
    %499 = vset.pattern.permute.xlu0 3
    %500 = vperm.xlu0 %499, %v57
    %v501 = vpop.permute.xlu0 %500
    %503 = vset.pattern.permute.xlu0 3
    %504 = vperm.xlu0 %503, %v58
    %v505 = vpop.permute.xlu0 %504
    %507 = vset.pattern.permute.xlu0 3
    %508 = vperm.xlu0 %507, %v59
    %v509 = vpop.permute.xlu0 %508
    %v511 = vperm.slane %v27, 3
    %v512 = vmul.f32 %v449, %v511
    %v513 = vmul.f32 %v453, %v511
    %v514 = vmul.f32 %v457, %v511
    %v515 = vmul.f32 %v461, %v511
    %v516 = vmul.f32 %v465, %v511
    %v517 = vmul.f32 %v469, %v511
    %v518 = vmul.f32 %v473, %v511
    %v519 = vmul.f32 %v477, %v511
    %v520 = vmul.f32 %v481, %v511
    %v521 = vmul.f32 %v485, %v511
    %v522 = vmul.f32 %v489, %v511
    %v523 = vmul.f32 %v493, %v511
    %v524 = vmul.f32 %v497, %v511
    %v525 = vmul.f32 %v501, %v511
    %v526 = vmul.f32 %v505, %v511
    %v527 = vmul.f32 %v509, %v511
    %v528 = vadd.f32 %v431, %v512
    %v529 = vadd.f32 %v432, %v513
    %v530 = vadd.f32 %v433, %v514
    %v531 = vadd.f32 %v434, %v515
    %v532 = vadd.f32 %v435, %v516
    %v533 = vadd.f32 %v436, %v517
    %v534 = vadd.f32 %v437, %v518
    %v535 = vadd.f32 %v438, %v519
    %v536 = vadd.f32 %v439, %v520
    %v537 = vadd.f32 %v440, %v521
    %v538 = vadd.f32 %v441, %v522
    %v539 = vadd.f32 %v442, %v523
    %v540 = vadd.f32 %v443, %v524
    %v541 = vadd.f32 %v444, %v525
    %v542 = vadd.f32 %v445, %v526
    %v543 = vadd.f32 %v446, %v527
    %v544 = vmax.f32 %v528, 0.0
    %v545 = vmax.f32 %v529, 0.0
    %v546 = vmax.f32 %v530, 0.0
    %v547 = vmax.f32 %v531, 0.0
    %v548 = vmax.f32 %v532, 0.0
    %v549 = vmax.f32 %v533, 0.0
    %v550 = vmax.f32 %v534, 0.0
    %v551 = vmax.f32 %v535, 0.0
    %v552 = vmax.f32 %v536, 0.0
    %v553 = vmax.f32 %v537, 0.0
    %v554 = vmax.f32 %v538, 0.0
    %v555 = vmax.f32 %v539, 0.0
    %v556 = vmax.f32 %v540, 0.0
    %v557 = vmax.f32 %v541, 0.0
    %v558 = vmax.f32 %v542, 0.0
    %v559 = vmax.f32 %v543, 0.0
    %v560 = vld [vmem:[%s3] sm:$0xf]
    %v561 = vld [vmem:[%s3 + $0x4] sm:$0xf]
    %v562 = vld [vmem:[%s3 + $0x8] sm:$0xf]
    %v563 = vld [vmem:[%s3 + $0xc] sm:$0xf]
    %v564 = vld [vmem:[%s3 + $0x10] sm:$0xf]
    %v565 = vld [vmem:[%s3 + $0x14] sm:$0xf]
    %v566 = vld [vmem:[%s3 + $0x18] sm:$0xf]
    %v567 = vld [vmem:[%s3 + $0x1c] sm:$0xf]
    %v568 = vld [vmem:[%s3 + $0x20] sm:$0xf]
    %v569 = vld [vmem:[%s3 + $0x24] sm:$0xf]
    %v570 = vld [vmem:[%s3 + $0x28] sm:$0xf]
    %v571 = vld [vmem:[%s3 + $0x2c] sm:$0xf]
    %v572 = vld [vmem:[%s3 + $0x30] sm:$0xf]
    %v573 = vld [vmem:[%s3 + $0x34] sm:$0xf]
    %v574 = vld [vmem:[%s3 + $0x38] sm:$0xf]
    %v575 = vld [vmem:[%s3 + $0x3c] sm:$0xf]
    %v576 = vld [vmem:[%s3 + $0x40] sm:$0xf]
    %v577 = vld [vmem:[%s3 + $0x44] sm:$0xf]
    %v578 = vld [vmem:[%s3 + $0x48] sm:$0xf]
    %v579 = vld [vmem:[%s3 + $0x4c] sm:$0xf]
    %v580 = vld [vmem:[%s3 + $0x50] sm:$0xf]
    %v581 = vld [vmem:[%s3 + $0x54] sm:$0xf]
    %v582 = vld [vmem:[%s3 + $0x58] sm:$0xf]
    %v583 = vld [vmem:[%s3 + $0x5c] sm:$0xf]
    %v584 = vld [vmem:[%s3 + $0x60] sm:$0xf]
    %v585 = vld [vmem:[%s3 + $0x64] sm:$0xf]
    %v586 = vld [vmem:[%s3 + $0x68] sm:$0xf]
    %v587 = vld [vmem:[%s3 + $0x6c] sm:$0xf]
    %v588 = vld [vmem:[%s3 + $0x70] sm:$0xf]
    %v589 = vld [vmem:[%s3 + $0x74] sm:$0xf]
    %v590 = vld [vmem:[%s3 + $0x78] sm:$0xf]
    %v591 = vld [vmem:[%s3 + $0x7c] sm:$0xf]
    %v592 = vpack.c.bf16 %v545, %v544
    %v593 = vpack.c.bf16 %v547, %v546
    %v594 = vpack.c.bf16 %v549, %v548
    %v595 = vpack.c.bf16 %v551, %v550
    %v596 = vpack.c.bf16 %v553, %v552
    %v597 = vpack.c.bf16 %v555, %v554
    %v598 = vpack.c.bf16 %v557, %v556
    %v599 = vpack.c.bf16 %v559, %v558
    %v600 = vld [vmem:[%s4] sm:$0xff]
    %v601 = vld [vmem:[%s4 + $0x8] sm:$0xff]
    %v602 = vld [vmem:[%s4 + $0x10] sm:$0xff]
    %v603 = vld [vmem:[%s4 + $0x18] sm:$0xff]
    %v604 = vld [vmem:[%s4 + $0x20] sm:$0xff]
    %v605 = vld [vmem:[%s4 + $0x28] sm:$0xff]
    %v606 = vld [vmem:[%s4 + $0x30] sm:$0xff]
    %v607 = vld [vmem:[%s4 + $0x38] sm:$0xff]
    %v608 = vld [vmem:[%s4 + $0x40] sm:$0xff]
    %v609 = vld [vmem:[%s4 + $0x48] sm:$0xff]
    %v610 = vld [vmem:[%s4 + $0x50] sm:$0xff]
    %v611 = vld [vmem:[%s4 + $0x58] sm:$0xff]
    %v612 = vld [vmem:[%s4 + $0x60] sm:$0xff]
    %v613 = vld [vmem:[%s4 + $0x68] sm:$0xff]
    %v614 = vld [vmem:[%s4 + $0x70] sm:$0xff]
    %v615 = vld [vmem:[%s4 + $0x78] sm:$0xff]
    %v616 = vld [vmem:[%s4 + $0x80] sm:$0xff]
    %v617 = vld [vmem:[%s4 + $0x88] sm:$0xff]
    %v618 = vld [vmem:[%s4 + $0x90] sm:$0xff]
    %v619 = vld [vmem:[%s4 + $0x98] sm:$0xff]
    %v620 = vld [vmem:[%s4 + $0xa0] sm:$0xff]
    %v621 = vld [vmem:[%s4 + $0xa8] sm:$0xff]
    %v622 = vld [vmem:[%s4 + $0xb0] sm:$0xff]
    %v623 = vld [vmem:[%s4 + $0xb8] sm:$0xff]
    %v624 = vld [vmem:[%s4 + $0xc0] sm:$0xff]
    %v625 = vld [vmem:[%s4 + $0xc8] sm:$0xff]
    %v626 = vld [vmem:[%s4 + $0xd0] sm:$0xff]
    %v627 = vld [vmem:[%s4 + $0xd8] sm:$0xff]
    %v628 = vld [vmem:[%s4 + $0xe0] sm:$0xff]
    %v629 = vld [vmem:[%s4 + $0xe8] sm:$0xff]
    %v630 = vld [vmem:[%s4 + $0xf0] sm:$0xff]
    %v631 = vld [vmem:[%s4 + $0xf8] sm:$0xff]
    %633 = vset.pattern.permute.xlu0 0
    %634 = vperm.xlu0 %633, %v600
    %v635 = vpop.permute.xlu0 %634
    %638 = vset.pattern.permute.xlu0 0
    %639 = vperm.xlu0 %638, %v601
    %v640 = vpop.permute.xlu0 %639
    %643 = vset.pattern.permute.xlu0 0
    %644 = vperm.xlu0 %643, %v602
    %v645 = vpop.permute.xlu0 %644
    %648 = vset.pattern.permute.xlu0 0
    %649 = vperm.xlu0 %648, %v603
    %v650 = vpop.permute.xlu0 %649
    %653 = vset.pattern.permute.xlu0 0
    %654 = vperm.xlu0 %653, %v604
    %v655 = vpop.permute.xlu0 %654
    %658 = vset.pattern.permute.xlu0 0
    %659 = vperm.xlu0 %658, %v605
    %v660 = vpop.permute.xlu0 %659
    %663 = vset.pattern.permute.xlu0 0
    %664 = vperm.xlu0 %663, %v606
    %v665 = vpop.permute.xlu0 %664
    %668 = vset.pattern.permute.xlu0 0
    %669 = vperm.xlu0 %668, %v607
    %v670 = vpop.permute.xlu0 %669
    %673 = vset.pattern.permute.xlu0 0
    %674 = vperm.xlu0 %673, %v608
    %v675 = vpop.permute.xlu0 %674
    %678 = vset.pattern.permute.xlu0 0
    %679 = vperm.xlu0 %678, %v609
    %v680 = vpop.permute.xlu0 %679
    %683 = vset.pattern.permute.xlu0 0
    %684 = vperm.xlu0 %683, %v610
    %v685 = vpop.permute.xlu0 %684
    %688 = vset.pattern.permute.xlu0 0
    %689 = vperm.xlu0 %688, %v611
    %v690 = vpop.permute.xlu0 %689
    %693 = vset.pattern.permute.xlu0 0
    %694 = vperm.xlu0 %693, %v612
    %v695 = vpop.permute.xlu0 %694
    %698 = vset.pattern.permute.xlu0 0
    %699 = vperm.xlu0 %698, %v613
    %v700 = vpop.permute.xlu0 %699
    %703 = vset.pattern.permute.xlu0 0
    %704 = vperm.xlu0 %703, %v614
    %v705 = vpop.permute.xlu0 %704
    %708 = vset.pattern.permute.xlu0 0
    %709 = vperm.xlu0 %708, %v615
    %v710 = vpop.permute.xlu0 %709
    %713 = vset.pattern.permute.xlu0 0
    %714 = vperm.xlu0 %713, %v616
    %v715 = vpop.permute.xlu0 %714
    %718 = vset.pattern.permute.xlu0 0
    %719 = vperm.xlu0 %718, %v617
    %v720 = vpop.permute.xlu0 %719
    %723 = vset.pattern.permute.xlu0 0
    %724 = vperm.xlu0 %723, %v618
    %v725 = vpop.permute.xlu0 %724
    %728 = vset.pattern.permute.xlu0 0
    %729 = vperm.xlu0 %728, %v619
    %v730 = vpop.permute.xlu0 %729
    %733 = vset.pattern.permute.xlu0 0
    %734 = vperm.xlu0 %733, %v620
    %v735 = vpop.permute.xlu0 %734
    %738 = vset.pattern.permute.xlu0 0
    %739 = vperm.xlu0 %738, %v621
    %v740 = vpop.permute.xlu0 %739
    %743 = vset.pattern.permute.xlu0 0
    %744 = vperm.xlu0 %743, %v622
    %v745 = vpop.permute.xlu0 %744
    %748 = vset.pattern.permute.xlu0 0
    %749 = vperm.xlu0 %748, %v623
    %v750 = vpop.permute.xlu0 %749
    %753 = vset.pattern.permute.xlu0 0
    %754 = vperm.xlu0 %753, %v624
    %v755 = vpop.permute.xlu0 %754
    %758 = vset.pattern.permute.xlu0 0
    %759 = vperm.xlu0 %758, %v625
    %v760 = vpop.permute.xlu0 %759
    %763 = vset.pattern.permute.xlu0 0
    %764 = vperm.xlu0 %763, %v626
    %v765 = vpop.permute.xlu0 %764
    %768 = vset.pattern.permute.xlu0 0
    %769 = vperm.xlu0 %768, %v627
    %v770 = vpop.permute.xlu0 %769
    %773 = vset.pattern.permute.xlu0 0
    %774 = vperm.xlu0 %773, %v628
    %v775 = vpop.permute.xlu0 %774
    %778 = vset.pattern.permute.xlu0 0
    %779 = vperm.xlu0 %778, %v629
    %v780 = vpop.permute.xlu0 %779
    %783 = vset.pattern.permute.xlu0 0
    %784 = vperm.xlu0 %783, %v630
    %v785 = vpop.permute.xlu0 %784
    %788 = vset.pattern.permute.xlu0 0
    %789 = vperm.xlu0 %788, %v631
    %v790 = vpop.permute.xlu0 %789
    %v824 = vunpack.c.l.b16 %v560
    %v825 = vunpack.c.l.b16 %v561
    %v826 = vunpack.c.l.b16 %v562
    %v827 = vunpack.c.l.b16 %v563
    %v828 = vunpack.c.l.b16 %v564
    %v829 = vunpack.c.l.b16 %v565
    %v830 = vunpack.c.l.b16 %v566
    %v831 = vunpack.c.l.b16 %v567
    %v832 = vunpack.c.l.b16 %v568
    %v833 = vunpack.c.l.b16 %v569
    %v834 = vunpack.c.l.b16 %v570
    %v835 = vunpack.c.l.b16 %v571
    %v836 = vunpack.c.l.b16 %v572
    %v837 = vunpack.c.l.b16 %v573
    %v838 = vunpack.c.l.b16 %v574
    %v839 = vunpack.c.l.b16 %v575
    %v840 = vunpack.c.l.b16 %v576
    %v841 = vunpack.c.l.b16 %v577
    %v842 = vunpack.c.l.b16 %v578
    %v843 = vunpack.c.l.b16 %v579
    %v844 = vunpack.c.l.b16 %v580
    %v845 = vunpack.c.l.b16 %v581
    %v846 = vunpack.c.l.b16 %v582
    %v847 = vunpack.c.l.b16 %v583
    %v848 = vunpack.c.l.b16 %v584
    %v849 = vunpack.c.l.b16 %v585
    %v850 = vunpack.c.l.b16 %v586
    %v851 = vunpack.c.l.b16 %v587
    %v852 = vunpack.c.l.b16 %v588
    %v853 = vunpack.c.l.b16 %v589
    %v854 = vunpack.c.l.b16 %v590
    %v855 = vunpack.c.l.b16 %v591
    %v856 = vpack.c.b16 %v825, %v824
    %v857 = vpack.c.b16 %v827, %v826
    %v858 = vpack.c.b16 %v829, %v828
    %v859 = vpack.c.b16 %v831, %v830
    %v860 = vpack.c.b16 %v833, %v832
    %v861 = vpack.c.b16 %v835, %v834
    %v862 = vpack.c.b16 %v837, %v836
    %v863 = vpack.c.b16 %v839, %v838
    %v864 = vpack.c.b16 %v841, %v840
    %v865 = vpack.c.b16 %v843, %v842
    %v866 = vpack.c.b16 %v845, %v844
    %v867 = vpack.c.b16 %v847, %v846
    %v868 = vpack.c.b16 %v849, %v848
    %v869 = vpack.c.b16 %v851, %v850
    %v870 = vpack.c.b16 %v853, %v852
    %v871 = vpack.c.b16 %v855, %v854
    %888 = vmatpush.bf16.msra.mxu0 %v599
    %889 = vmatpush.bf16.msra.mxu0 %v598
    %890 = vmatpush.bf16.msra.mxu0 %v597
    %891 = vmatpush.bf16.msra.mxu0 %v596
    %892 = vmatpush.bf16.msra.mxu0 %v595
    %893 = vmatpush.bf16.msra.mxu0 %v594
    %894 = vmatpush.bf16.msra.mxu0 %v593
    %895 = vmatpush.bf16.msra.mxu0 %v592
    %896 = vmatmul.bf16.gmra.mxu0 %v856
    %v897 = vpop.f32.mrf.mxu0
    %v898 = vadd.f32 %v635, %v897
    %v899 = vpop.f32.mrf.mxu0
    %v900 = vadd.f32 %v640, %v899
    %901 = vmatmul.bf16.gmra.mxu0 %v857
    %v902 = vpop.f32.mrf.mxu0
    %v903 = vadd.f32 %v645, %v902
    %v904 = vpop.f32.mrf.mxu0
    %v905 = vadd.f32 %v650, %v904
    %906 = vmatmul.bf16.gmra.mxu0 %v858
    %v907 = vpop.f32.mrf.mxu0
    %v908 = vadd.f32 %v655, %v907
    %v909 = vpop.f32.mrf.mxu0
    %v910 = vadd.f32 %v660, %v909
    %911 = vmatmul.bf16.gmra.mxu0 %v859
    %v912 = vpop.f32.mrf.mxu0
    %v913 = vadd.f32 %v665, %v912
    %v914 = vpop.f32.mrf.mxu0
    %v915 = vadd.f32 %v670, %v914
    %916 = vmatmul.bf16.gmra.mxu0 %v860
    %v917 = vpop.f32.mrf.mxu0
    %v918 = vadd.f32 %v675, %v917
    %v919 = vpop.f32.mrf.mxu0
    %v920 = vadd.f32 %v680, %v919
    %921 = vmatmul.bf16.gmra.mxu0 %v861
    %v922 = vpop.f32.mrf.mxu0
    %v923 = vadd.f32 %v685, %v922
    %v924 = vpop.f32.mrf.mxu0
    %v925 = vadd.f32 %v690, %v924
    %926 = vmatmul.bf16.gmra.mxu0 %v862
    %v927 = vpop.f32.mrf.mxu0
    %v928 = vadd.f32 %v695, %v927
    %v929 = vpop.f32.mrf.mxu0
    %v930 = vadd.f32 %v700, %v929
    %931 = vmatmul.bf16.gmra.mxu0 %v863
    %v932 = vpop.f32.mrf.mxu0
    %v933 = vadd.f32 %v705, %v932
    %v934 = vpop.f32.mrf.mxu0
    %v935 = vadd.f32 %v710, %v934
    %936 = vmatmul.bf16.gmra.mxu0 %v864
    %v937 = vpop.f32.mrf.mxu0
    %v938 = vadd.f32 %v715, %v937
    %v939 = vpop.f32.mrf.mxu0
    %v940 = vadd.f32 %v720, %v939
    %941 = vmatmul.bf16.gmra.mxu0 %v865
    %v942 = vpop.f32.mrf.mxu0
    %v943 = vadd.f32 %v725, %v942
    %v944 = vpop.f32.mrf.mxu0
    %v945 = vadd.f32 %v730, %v944
    %946 = vmatmul.bf16.gmra.mxu0 %v866
    %v947 = vpop.f32.mrf.mxu0
    %v948 = vadd.f32 %v735, %v947
    %v949 = vpop.f32.mrf.mxu0
    %v950 = vadd.f32 %v740, %v949
    %951 = vmatmul.bf16.gmra.mxu0 %v867
    %v952 = vpop.f32.mrf.mxu0
    %v953 = vadd.f32 %v745, %v952
    %v954 = vpop.f32.mrf.mxu0
    %v955 = vadd.f32 %v750, %v954
    %956 = vmatmul.bf16.gmra.mxu0 %v868
    %v957 = vpop.f32.mrf.mxu0
    %v958 = vadd.f32 %v755, %v957
    %v959 = vpop.f32.mrf.mxu0
    %v960 = vadd.f32 %v760, %v959
    %961 = vmatmul.bf16.gmra.mxu0 %v869
    %v962 = vpop.f32.mrf.mxu0
    %v963 = vadd.f32 %v765, %v962
    %v964 = vpop.f32.mrf.mxu0
    %v965 = vadd.f32 %v770, %v964
    %966 = vmatmul.bf16.gmra.mxu0 %v870
    %v967 = vpop.f32.mrf.mxu0
    %v968 = vadd.f32 %v775, %v967
    %v969 = vpop.f32.mrf.mxu0
    %v970 = vadd.f32 %v780, %v969
    %971 = vmatmul.bf16.gmra.mxu0 %v871
    %v972 = vpop.f32.mrf.mxu0
    %v973 = vadd.f32 %v785, %v972
    %v974 = vpop.f32.mrf.mxu0
    %v975 = vadd.f32 %v790, %v974
    %976 = vdwg.mxu0
    %v977 = vmax.f32 %v898, 0.0
    %v978 = vmax.f32 %v900, 0.0
    %v979 = vmax.f32 %v903, 0.0
    %v980 = vmax.f32 %v905, 0.0
    %v981 = vmax.f32 %v908, 0.0
    %v982 = vmax.f32 %v910, 0.0
    %v983 = vmax.f32 %v913, 0.0
    %v984 = vmax.f32 %v915, 0.0
    %v985 = vmax.f32 %v918, 0.0
    %v986 = vmax.f32 %v920, 0.0
    %v987 = vmax.f32 %v923, 0.0
    %v988 = vmax.f32 %v925, 0.0
    %v989 = vmax.f32 %v928, 0.0
    %v990 = vmax.f32 %v930, 0.0
    %v991 = vmax.f32 %v933, 0.0
    %v992 = vmax.f32 %v935, 0.0
    %v993 = vmax.f32 %v938, 0.0
    %v994 = vmax.f32 %v940, 0.0
    %v995 = vmax.f32 %v943, 0.0
    %v996 = vmax.f32 %v945, 0.0
    %v997 = vmax.f32 %v948, 0.0
    %v998 = vmax.f32 %v950, 0.0
    %v999 = vmax.f32 %v953, 0.0
    %v1000 = vmax.f32 %v955, 0.0
    %v1001 = vmax.f32 %v958, 0.0
    %v1002 = vmax.f32 %v960, 0.0
    %v1003 = vmax.f32 %v963, 0.0
    %v1004 = vmax.f32 %v965, 0.0
    %v1005 = vmax.f32 %v968, 0.0
    %v1006 = vmax.f32 %v970, 0.0
    %v1007 = vmax.f32 %v973, 0.0
    %v1008 = vmax.f32 %v975, 0.0
    %v1009 = vld [vmem:[%s5] sm:$0xff]
    %v1010 = vld [vmem:[%s5 + $0x8] sm:$0xff]
    %v1011 = vld [vmem:[%s5 + $0x10] sm:$0xff]
    %v1012 = vld [vmem:[%s5 + $0x18] sm:$0xff]
    %v1013 = vld [vmem:[%s5 + $0x20] sm:$0xff]
    %v1014 = vld [vmem:[%s5 + $0x28] sm:$0xff]
    %v1015 = vld [vmem:[%s5 + $0x30] sm:$0xff]
    %v1016 = vld [vmem:[%s5 + $0x38] sm:$0xff]
    %v1017 = vld [vmem:[%s5 + $0x40] sm:$0xff]
    %v1018 = vld [vmem:[%s5 + $0x48] sm:$0xff]
    %v1019 = vld [vmem:[%s5 + $0x50] sm:$0xff]
    %v1020 = vld [vmem:[%s5 + $0x58] sm:$0xff]
    %v1021 = vld [vmem:[%s5 + $0x60] sm:$0xff]
    %v1022 = vld [vmem:[%s5 + $0x68] sm:$0xff]
    %v1023 = vld [vmem:[%s5 + $0x70] sm:$0xff]
    %v1024 = vld [vmem:[%s5 + $0x78] sm:$0xff]
    %v1025 = vld [vmem:[%s5 + $0x80] sm:$0xff]
    %v1026 = vld [vmem:[%s5 + $0x88] sm:$0xff]
    %v1027 = vld [vmem:[%s5 + $0x90] sm:$0xff]
    %v1028 = vld [vmem:[%s5 + $0x98] sm:$0xff]
    %v1029 = vld [vmem:[%s5 + $0xa0] sm:$0xff]
    %v1030 = vld [vmem:[%s5 + $0xa8] sm:$0xff]
    %v1031 = vld [vmem:[%s5 + $0xb0] sm:$0xff]
    %v1032 = vld [vmem:[%s5 + $0xb8] sm:$0xff]
    %v1033 = vld [vmem:[%s5 + $0xc0] sm:$0xff]
    %v1034 = vld [vmem:[%s5 + $0xc8] sm:$0xff]
    %v1035 = vld [vmem:[%s5 + $0xd0] sm:$0xff]
    %v1036 = vld [vmem:[%s5 + $0xd8] sm:$0xff]
    %v1037 = vld [vmem:[%s5 + $0xe0] sm:$0xff]
    %v1038 = vld [vmem:[%s5 + $0xe8] sm:$0xff]
    %v1039 = vld [vmem:[%s5 + $0xf0] sm:$0xff]
    %v1040 = vld [vmem:[%s5 + $0xf8] sm:$0xff]
    %1042 = vset.pattern.permute.xlu0 0
    %1043 = vperm.xlu0 %1042, %v1009
    %v1044 = vpop.permute.xlu0 %1043
    %1047 = vset.pattern.permute.xlu0 0
    %1048 = vperm.xlu0 %1047, %v1010
    %v1049 = vpop.permute.xlu0 %1048
    %1052 = vset.pattern.permute.xlu0 0
    %1053 = vperm.xlu0 %1052, %v1011
    %v1054 = vpop.permute.xlu0 %1053
    %1057 = vset.pattern.permute.xlu0 0
    %1058 = vperm.xlu0 %1057, %v1012
    %v1059 = vpop.permute.xlu0 %1058
    %1062 = vset.pattern.permute.xlu0 0
    %1063 = vperm.xlu0 %1062, %v1013
    %v1064 = vpop.permute.xlu0 %1063
    %1067 = vset.pattern.permute.xlu0 0
    %1068 = vperm.xlu0 %1067, %v1014
    %v1069 = vpop.permute.xlu0 %1068
    %1072 = vset.pattern.permute.xlu0 0
    %1073 = vperm.xlu0 %1072, %v1015
    %v1074 = vpop.permute.xlu0 %1073
    %1077 = vset.pattern.permute.xlu0 0
    %1078 = vperm.xlu0 %1077, %v1016
    %v1079 = vpop.permute.xlu0 %1078
    %1082 = vset.pattern.permute.xlu0 0
    %1083 = vperm.xlu0 %1082, %v1017
    %v1084 = vpop.permute.xlu0 %1083
    %1087 = vset.pattern.permute.xlu0 0
    %1088 = vperm.xlu0 %1087, %v1018
    %v1089 = vpop.permute.xlu0 %1088
    %1092 = vset.pattern.permute.xlu0 0
    %1093 = vperm.xlu0 %1092, %v1019
    %v1094 = vpop.permute.xlu0 %1093
    %1097 = vset.pattern.permute.xlu0 0
    %1098 = vperm.xlu0 %1097, %v1020
    %v1099 = vpop.permute.xlu0 %1098
    %1102 = vset.pattern.permute.xlu0 0
    %1103 = vperm.xlu0 %1102, %v1021
    %v1104 = vpop.permute.xlu0 %1103
    %1107 = vset.pattern.permute.xlu0 0
    %1108 = vperm.xlu0 %1107, %v1022
    %v1109 = vpop.permute.xlu0 %1108
    %1112 = vset.pattern.permute.xlu0 0
    %1113 = vperm.xlu0 %1112, %v1023
    %v1114 = vpop.permute.xlu0 %1113
    %1117 = vset.pattern.permute.xlu0 0
    %1118 = vperm.xlu0 %1117, %v1024
    %v1119 = vpop.permute.xlu0 %1118
    %1122 = vset.pattern.permute.xlu0 0
    %1123 = vperm.xlu0 %1122, %v1025
    %v1124 = vpop.permute.xlu0 %1123
    %1127 = vset.pattern.permute.xlu0 0
    %1128 = vperm.xlu0 %1127, %v1026
    %v1129 = vpop.permute.xlu0 %1128
    %1132 = vset.pattern.permute.xlu0 0
    %1133 = vperm.xlu0 %1132, %v1027
    %v1134 = vpop.permute.xlu0 %1133
    %1137 = vset.pattern.permute.xlu0 0
    %1138 = vperm.xlu0 %1137, %v1028
    %v1139 = vpop.permute.xlu0 %1138
    %1142 = vset.pattern.permute.xlu0 0
    %1143 = vperm.xlu0 %1142, %v1029
    %v1144 = vpop.permute.xlu0 %1143
    %1147 = vset.pattern.permute.xlu0 0
    %1148 = vperm.xlu0 %1147, %v1030
    %v1149 = vpop.permute.xlu0 %1148
    %1152 = vset.pattern.permute.xlu0 0
    %1153 = vperm.xlu0 %1152, %v1031
    %v1154 = vpop.permute.xlu0 %1153
    %1157 = vset.pattern.permute.xlu0 0
    %1158 = vperm.xlu0 %1157, %v1032
    %v1159 = vpop.permute.xlu0 %1158
    %1162 = vset.pattern.permute.xlu0 0
    %1163 = vperm.xlu0 %1162, %v1033
    %v1164 = vpop.permute.xlu0 %1163
    %1167 = vset.pattern.permute.xlu0 0
    %1168 = vperm.xlu0 %1167, %v1034
    %v1169 = vpop.permute.xlu0 %1168
    %1172 = vset.pattern.permute.xlu0 0
    %1173 = vperm.xlu0 %1172, %v1035
    %v1174 = vpop.permute.xlu0 %1173
    %1177 = vset.pattern.permute.xlu0 0
    %1178 = vperm.xlu0 %1177, %v1036
    %v1179 = vpop.permute.xlu0 %1178
    %1182 = vset.pattern.permute.xlu0 0
    %1183 = vperm.xlu0 %1182, %v1037
    %v1184 = vpop.permute.xlu0 %1183
    %1187 = vset.pattern.permute.xlu0 0
    %1188 = vperm.xlu0 %1187, %v1038
    %v1189 = vpop.permute.xlu0 %1188
    %1192 = vset.pattern.permute.xlu0 0
    %1193 = vperm.xlu0 %1192, %v1039
    %v1194 = vpop.permute.xlu0 %1193
    %1197 = vset.pattern.permute.xlu0 0
    %1198 = vperm.xlu0 %1197, %v1040
    %v1199 = vpop.permute.xlu0 %1198
    %v1201 = vmul.f32 %v977, %v1044
    %v1202 = vmul.f32 %v978, %v1049
    %v1203 = vmul.f32 %v979, %v1054
    %v1204 = vmul.f32 %v980, %v1059
    %v1205 = vmul.f32 %v981, %v1064
    %v1206 = vmul.f32 %v982, %v1069
    %v1207 = vmul.f32 %v983, %v1074
    %v1208 = vmul.f32 %v984, %v1079
    %v1209 = vmul.f32 %v985, %v1084
    %v1210 = vmul.f32 %v986, %v1089
    %v1211 = vmul.f32 %v987, %v1094
    %v1212 = vmul.f32 %v988, %v1099
    %v1213 = vmul.f32 %v989, %v1104
    %v1214 = vmul.f32 %v990, %v1109
    %v1215 = vmul.f32 %v991, %v1114
    %v1216 = vmul.f32 %v992, %v1119
    %v1217 = vmul.f32 %v993, %v1124
    %v1218 = vmul.f32 %v994, %v1129
    %v1219 = vmul.f32 %v995, %v1134
    %v1220 = vmul.f32 %v996, %v1139
    %v1221 = vmul.f32 %v997, %v1144
    %v1222 = vmul.f32 %v998, %v1149
    %v1223 = vmul.f32 %v999, %v1154
    %v1224 = vmul.f32 %v1000, %v1159
    %v1225 = vmul.f32 %v1001, %v1164
    %v1226 = vmul.f32 %v1002, %v1169
    %v1227 = vmul.f32 %v1003, %v1174
    %v1228 = vmul.f32 %v1004, %v1179
    %v1229 = vmul.f32 %v1005, %v1184
    %v1230 = vmul.f32 %v1006, %v1189
    %v1231 = vmul.f32 %v1007, %v1194
    %v1232 = vmul.f32 %v1008, %v1199
    %v1233 = vadd.f32 %v1201, %v1202
    %v1234 = vadd.f32 %v1233, %v1203
    %v1235 = vadd.f32 %v1234, %v1204
    %v1236 = vadd.f32 %v1235, %v1205
    %v1237 = vadd.f32 %v1236, %v1206
    %v1238 = vadd.f32 %v1237, %v1207
    %v1239 = vadd.f32 %v1238, %v1208
    %v1240 = vadd.f32 %v1239, %v1209
    %v1241 = vadd.f32 %v1240, %v1210
    %v1242 = vadd.f32 %v1241, %v1211
    %v1243 = vadd.f32 %v1242, %v1212
    %v1244 = vadd.f32 %v1243, %v1213
    %v1245 = vadd.f32 %v1244, %v1214
    %v1246 = vadd.f32 %v1245, %v1215
    %v1247 = vadd.f32 %v1246, %v1216
    %v1248 = vadd.f32 %v1247, %v1217
    %v1249 = vadd.f32 %v1248, %v1218
    %v1250 = vadd.f32 %v1249, %v1219
    %v1251 = vadd.f32 %v1250, %v1220
    %v1252 = vadd.f32 %v1251, %v1221
    %v1253 = vadd.f32 %v1252, %v1222
    %v1254 = vadd.f32 %v1253, %v1223
    %v1255 = vadd.f32 %v1254, %v1224
    %v1256 = vadd.f32 %v1255, %v1225
    %v1257 = vadd.f32 %v1256, %v1226
    %v1258 = vadd.f32 %v1257, %v1227
    %v1259 = vadd.f32 %v1258, %v1228
    %v1260 = vadd.f32 %v1259, %v1229
    %v1261 = vadd.f32 %v1260, %v1230
    %v1262 = vadd.f32 %v1261, %v1231
    %v1263 = vadd.f32 %v1262, %v1232
    %v1264 = vrot.slane %v1263, 4
    %v1265 = vadd.f32 %v1263, %v1264
    %v1266 = vrot.slane %v1265, 2
    %v1267 = vadd.f32 %v1265, %v1266
    %v1268 = vrot.slane %v1267, 1
    %v1269 = vadd.f32 %v1267, %v1268
    %1270 = vset.pattern.permute.xlu0 1
    %1271 = vperm.xlu0 %1270, %v1009
    %v1272 = vpop.permute.xlu0 %1271
    %1274 = vset.pattern.permute.xlu0 1
    %1275 = vperm.xlu0 %1274, %v1010
    %v1276 = vpop.permute.xlu0 %1275
    %1278 = vset.pattern.permute.xlu0 1
    %1279 = vperm.xlu0 %1278, %v1011
    %v1280 = vpop.permute.xlu0 %1279
    %1282 = vset.pattern.permute.xlu0 1
    %1283 = vperm.xlu0 %1282, %v1012
    %v1284 = vpop.permute.xlu0 %1283
    %1286 = vset.pattern.permute.xlu0 1
    %1287 = vperm.xlu0 %1286, %v1013
    %v1288 = vpop.permute.xlu0 %1287
    %1290 = vset.pattern.permute.xlu0 1
    %1291 = vperm.xlu0 %1290, %v1014
    %v1292 = vpop.permute.xlu0 %1291
    %1294 = vset.pattern.permute.xlu0 1
    %1295 = vperm.xlu0 %1294, %v1015
    %v1296 = vpop.permute.xlu0 %1295
    %1298 = vset.pattern.permute.xlu0 1
    %1299 = vperm.xlu0 %1298, %v1016
    %v1300 = vpop.permute.xlu0 %1299
    %1302 = vset.pattern.permute.xlu0 1
    %1303 = vperm.xlu0 %1302, %v1017
    %v1304 = vpop.permute.xlu0 %1303
    %1306 = vset.pattern.permute.xlu0 1
    %1307 = vperm.xlu0 %1306, %v1018
    %v1308 = vpop.permute.xlu0 %1307
    %1310 = vset.pattern.permute.xlu0 1
    %1311 = vperm.xlu0 %1310, %v1019
    %v1312 = vpop.permute.xlu0 %1311
    %1314 = vset.pattern.permute.xlu0 1
    %1315 = vperm.xlu0 %1314, %v1020
    %v1316 = vpop.permute.xlu0 %1315
    %1318 = vset.pattern.permute.xlu0 1
    %1319 = vperm.xlu0 %1318, %v1021
    %v1320 = vpop.permute.xlu0 %1319
    %1322 = vset.pattern.permute.xlu0 1
    %1323 = vperm.xlu0 %1322, %v1022
    %v1324 = vpop.permute.xlu0 %1323
    %1326 = vset.pattern.permute.xlu0 1
    %1327 = vperm.xlu0 %1326, %v1023
    %v1328 = vpop.permute.xlu0 %1327
    %1330 = vset.pattern.permute.xlu0 1
    %1331 = vperm.xlu0 %1330, %v1024
    %v1332 = vpop.permute.xlu0 %1331
    %1334 = vset.pattern.permute.xlu0 1
    %1335 = vperm.xlu0 %1334, %v1025
    %v1336 = vpop.permute.xlu0 %1335
    %1338 = vset.pattern.permute.xlu0 1
    %1339 = vperm.xlu0 %1338, %v1026
    %v1340 = vpop.permute.xlu0 %1339
    %1342 = vset.pattern.permute.xlu0 1
    %1343 = vperm.xlu0 %1342, %v1027
    %v1344 = vpop.permute.xlu0 %1343
    %1346 = vset.pattern.permute.xlu0 1
    %1347 = vperm.xlu0 %1346, %v1028
    %v1348 = vpop.permute.xlu0 %1347
    %1350 = vset.pattern.permute.xlu0 1
    %1351 = vperm.xlu0 %1350, %v1029
    %v1352 = vpop.permute.xlu0 %1351
    %1354 = vset.pattern.permute.xlu0 1
    %1355 = vperm.xlu0 %1354, %v1030
    %v1356 = vpop.permute.xlu0 %1355
    %1358 = vset.pattern.permute.xlu0 1
    %1359 = vperm.xlu0 %1358, %v1031
    %v1360 = vpop.permute.xlu0 %1359
    %1362 = vset.pattern.permute.xlu0 1
    %1363 = vperm.xlu0 %1362, %v1032
    %v1364 = vpop.permute.xlu0 %1363
    %1366 = vset.pattern.permute.xlu0 1
    %1367 = vperm.xlu0 %1366, %v1033
    %v1368 = vpop.permute.xlu0 %1367
    %1370 = vset.pattern.permute.xlu0 1
    %1371 = vperm.xlu0 %1370, %v1034
    %v1372 = vpop.permute.xlu0 %1371
    %1374 = vset.pattern.permute.xlu0 1
    %1375 = vperm.xlu0 %1374, %v1035
    %v1376 = vpop.permute.xlu0 %1375
    %1378 = vset.pattern.permute.xlu0 1
    %1379 = vperm.xlu0 %1378, %v1036
    %v1380 = vpop.permute.xlu0 %1379
    %1382 = vset.pattern.permute.xlu0 1
    %1383 = vperm.xlu0 %1382, %v1037
    %v1384 = vpop.permute.xlu0 %1383
    %1386 = vset.pattern.permute.xlu0 1
    %1387 = vperm.xlu0 %1386, %v1038
    %v1388 = vpop.permute.xlu0 %1387
    %1390 = vset.pattern.permute.xlu0 1
    %1391 = vperm.xlu0 %1390, %v1039
    %v1392 = vpop.permute.xlu0 %1391
    %1394 = vset.pattern.permute.xlu0 1
    %1395 = vperm.xlu0 %1394, %v1040
    %v1396 = vpop.permute.xlu0 %1395
    %v1398 = vmul.f32 %v977, %v1272
    %v1399 = vmul.f32 %v978, %v1276
    %v1400 = vmul.f32 %v979, %v1280
    %v1401 = vmul.f32 %v980, %v1284
    %v1402 = vmul.f32 %v981, %v1288
    %v1403 = vmul.f32 %v982, %v1292
    %v1404 = vmul.f32 %v983, %v1296
    %v1405 = vmul.f32 %v984, %v1300
    %v1406 = vmul.f32 %v985, %v1304
    %v1407 = vmul.f32 %v986, %v1308
    %v1408 = vmul.f32 %v987, %v1312
    %v1409 = vmul.f32 %v988, %v1316
    %v1410 = vmul.f32 %v989, %v1320
    %v1411 = vmul.f32 %v990, %v1324
    %v1412 = vmul.f32 %v991, %v1328
    %v1413 = vmul.f32 %v992, %v1332
    %v1414 = vmul.f32 %v993, %v1336
    %v1415 = vmul.f32 %v994, %v1340
    %v1416 = vmul.f32 %v995, %v1344
    %v1417 = vmul.f32 %v996, %v1348
    %v1418 = vmul.f32 %v997, %v1352
    %v1419 = vmul.f32 %v998, %v1356
    %v1420 = vmul.f32 %v999, %v1360
    %v1421 = vmul.f32 %v1000, %v1364
    %v1422 = vmul.f32 %v1001, %v1368
    %v1423 = vmul.f32 %v1002, %v1372
    %v1424 = vmul.f32 %v1003, %v1376
    %v1425 = vmul.f32 %v1004, %v1380
    %v1426 = vmul.f32 %v1005, %v1384
    %v1427 = vmul.f32 %v1006, %v1388
    %v1428 = vmul.f32 %v1007, %v1392
    %v1429 = vmul.f32 %v1008, %v1396
    %v1430 = vadd.f32 %v1398, %v1399
    %v1431 = vadd.f32 %v1430, %v1400
    %v1432 = vadd.f32 %v1431, %v1401
    %v1433 = vadd.f32 %v1432, %v1402
    %v1434 = vadd.f32 %v1433, %v1403
    %v1435 = vadd.f32 %v1434, %v1404
    %v1436 = vadd.f32 %v1435, %v1405
    %v1437 = vadd.f32 %v1436, %v1406
    %v1438 = vadd.f32 %v1437, %v1407
    %v1439 = vadd.f32 %v1438, %v1408
    %v1440 = vadd.f32 %v1439, %v1409
    %v1441 = vadd.f32 %v1440, %v1410
    %v1442 = vadd.f32 %v1441, %v1411
    %v1443 = vadd.f32 %v1442, %v1412
    %v1444 = vadd.f32 %v1443, %v1413
    %v1445 = vadd.f32 %v1444, %v1414
    %v1446 = vadd.f32 %v1445, %v1415
    %v1447 = vadd.f32 %v1446, %v1416
    %v1448 = vadd.f32 %v1447, %v1417
    %v1449 = vadd.f32 %v1448, %v1418
    %v1450 = vadd.f32 %v1449, %v1419
    %v1451 = vadd.f32 %v1450, %v1420
    %v1452 = vadd.f32 %v1451, %v1421
    %v1453 = vadd.f32 %v1452, %v1422
    %v1454 = vadd.f32 %v1453, %v1423
    %v1455 = vadd.f32 %v1454, %v1424
    %v1456 = vadd.f32 %v1455, %v1425
    %v1457 = vadd.f32 %v1456, %v1426
    %v1458 = vadd.f32 %v1457, %v1427
    %v1459 = vadd.f32 %v1458, %v1428
    %v1460 = vadd.f32 %v1459, %v1429
    %v1461 = vrot.slane %v1460, 4
    %v1462 = vadd.f32 %v1460, %v1461
    %v1463 = vrot.slane %v1462, 2
    %v1464 = vadd.f32 %v1462, %v1463
    %v1465 = vrot.slane %v1464, 1
    %v1466 = vadd.f32 %v1464, %v1465
    %vm1467 = vcmask 1040384
    %v1468 = vsel %vm1467, %v1269, %v1466
    %v1469 = vld [vmem:[%s6] sm:$0x3]
    %1471 = vset.pattern.permute.xlu0 0
    %1472 = vperm.xlu0 %1471, %v1469
    %v1473 = vpop.permute.xlu0 %1472
    %v1475 = vadd.f32 %v1468, %v1473
    %vm1476 = vcmask 1041408
    %v1477 = vsel %vm1476, %v1475, -inf
    %v1478 = vrot.slane %v1477, 4
    %v1479 = vmax.f32 %v1477, %v1478
    %v1480 = vrot.slane %v1479, 2
    %v1481 = vmax.f32 %v1479, %v1480
    %v1482 = vrot.slane %v1481, 1
    %v1483 = vmax.f32 %v1481, %v1482
    %v1484 = vsub.f32 %v1475, %v1483
    %v1485 = vmul.f32 %v1484, 1.442695
    %v1486 = vpow.pop %v1485
    %v1487 = vsel %vm1476, %v1486, 0.0
    %v1488 = vrot.slane %v1487, 4
    %v1489 = vadd.f32 %v1487, %v1488
    %v1490 = vrot.slane %v1489, 2
    %v1491 = vadd.f32 %v1489, %v1490
    %v1492 = vrot.slane %v1491, 1
    %v1493 = vadd.f32 %v1491, %v1492
    %v1494 = vrcp.pop %v1493
    %v1495 = vmul.f32 %v1493, %v1494
    %v1496 = vsub.f32 1.0, %v1495
    %v1497 = vmul.f32 %v1494, %v1496
    %v1498 = vadd.f32 %v1494, %v1497
    %vm1499 = vweird.f32 %v1493
    %vm1500 = vweird.f32 %v1494
    %vm1501 = vmor %vm1499, %vm1500
    %v1502 = vsel %vm1501, %v1494, %v1498
    %v1503 = vand.u32 2147483647, %v1493
    %vm1504 = vcmp.eq.f32.partialorder %v1503, 8.507059e+37
    %v1505 = vand.u32 %v1493, 2147483648
    %v1506 = vor.u32 1.1754944e-38, %v1505
    %v1507 = vsel %vm1504, %v1506, %v1502
    %v1508 = vmul.f32 %v1486, %v1507
    %1509 = vst [vmem:[#allocation2] sm:$0x3] %v1508
    // Predicated region
    $region30: #{actor_forward.1} parent=1 // pred_check
      _
    $region31: #{actor_forward.1} parent=1 // pred_check_branch
      %1511 = sbr.rel (0) target = $region33
    $region32: #{actor_forward.1} parent=1 // pred_region
      %1513 = vsyncadd [#allocation3], 0
      %s1515 = sshll.u32 [#allocation2], 4
      %s1516 = int_to_ptr.vmem [resolvable:$true] %s1515
      %s1517 = sshll.u32 %s7, 4
      %s1518 = int_to_ptr.hbm [resolvable:$true] %s1517
      %1520 = dma.vmem_to_hbm [thread:$0]  %s1516, 32, %s1518, [#allocation3]
    $region33: #{actor_forward.1} parent=1 // pred_fallthru
      _
    // Predicated region
    $region34: #{actor_forward.1} parent=1 // pred_check
      _
    $region35: #{actor_forward.1} parent=1 // pred_check_branch
      %1522 = sbr.rel (0) target = $region37
    $region36: #{actor_forward.1} parent=1 // pred_region
      %1524 = dma.done [#allocation3], 32
    $region37: #{actor_forward.1} parent=1 // pred_fallthru
      _
    %1525 = vsyncpa [#allocation3], 1

</llo_original>
